<compile_context>
chip_gen: v5e
topology: v5e:2x2
jax: 0.10.0
libtpu: 0.0.40
codegen_flags: <defaults>
</compile_context>

<pallas_src>
import jax
import jax.numpy as jnp
from jax.experimental import pallas as pl
from jax.experimental.pallas import tpu as pltpu

_LANE_CANDIDATES = (1024, 512, 256, 128)   # lane-dense widths (multiples of 128)
_MIN_BLOCK_BYTES = 1 << 20                 # keep ~0.35us/step overhead negligible
_TARGET_STEPS = 8                          # >= ~4 pipeline steps per TC on v7x


def _hard_swish_kernel(x_ref, o_ref):
    # hard_swish(x) = x * clamp(x + 3, 0, 6) / 6 ; math in f32, cast on store.
    x = x_ref[...].astype(jnp.float32)
    hs = jnp.clip(x + 3.0, 0.0, 6.0) * (1.0 / 6.0)
    o_ref[...] = (x * hs).astype(o_ref.dtype)


def _sublane_multiple(dtype) -> int:
    # Row-tile granularity so sub-32-bit dtypes stay sublane-packed.
    # (Integer inputs are not expected: PyTorch HardSwish is float-only.)
    return {4: 8, 2: 16, 1: 32}.get(jnp.dtype(dtype).itemsize, 8)


def _vmem_budget_bytes() -> int:
    # Per-generation VMEM capacity (128 MiB v5e/v6e, 64 MiB per TC on v7x).
    try:
        cap = int(pltpu.get_tpu_info().vmem_capacity_bytes)
        if cap > 0:
            return cap
    except Exception:
        pass
    return 64 << 20  # conservative fallback (v7x per-TC physical VMEM)


def hard_swish(x: jax.Array, *, block_bytes: int = 4 * 1024 * 1024,
               min_pallas_elems: int = 1 << 20,
               donate: bool = False) -> jax.Array:
    """Elementwise hard-swish; shape/dtype preserved (NCHW or anything else)."""
    orig_shape = x.shape
    dtype = x.dtype
    n = x.size
    if n == 0:
        return x
    # Tiny inputs: a pallas_call + DMA setup costs far more than the math, and
    # XLA fuses this expression into neighbors for free.
    if n < min_pallas_elems:
        xf = x.astype(jnp.float32)
        return (xf * jnp.clip(xf + 3.0, 0.0, 6.0) * (1.0 / 6.0)).astype(dtype)

    itemsize = jnp.dtype(dtype).itemsize
    sub = _sublane_multiple(dtype)

    # Lane width: largest candidate that divides n exactly -> exact reshape,
    # no whole-array pad copy and no out[:n] slice copy.  Any lane >= 128 keeps
    # stores unmasked and each (tr, lane) block fully contiguous in HBM.
    lane = next((c for c in _LANE_CANDIDATES if n % c == 0), None)
    flat = x.reshape(-1)
    if lane is None:
        # Rare fallback: n not a multiple of 128 -> pad a small tail.
        # TODO(synk): replace with an in-kernel masked store on the last block.
        lane = 128
        padded = pl.cdiv(n, lane) * lane
        flat = jnp.pad(flat, (0, padded - n))
    else:
        padded = n
    rows = padded // lane
    x2d = flat.reshape(rows, lane)

    # Generation-aware VMEM budget: double-buffered (in + out) blocks plus
    # headroom must fit, so clamp the per-block byte target first.
    budget = _vmem_budget_bytes()
    usable = max(16 << 20, budget - (8 << 20))
    block_bytes = max(_MIN_BLOCK_BYTES, min(block_bytes, usable // 4))

    row_bytes = lane * itemsize
    tr_max = max(sub, (block_bytes // row_bytes) // sub * sub)
    tr_min = max(sub, pl.cdiv(pl.cdiv(_MIN_BLOCK_BYTES, row_bytes), sub) * sub)
    # Aim for >= _TARGET_STEPS grid steps (so each TC on v7x gets several
    # pipelined blocks and v5e/v6e overlap in-DMA/compute/out-DMA), while
    # keeping each block >= ~1 MiB and <= block_bytes.
    tr_steps = max(sub, pl.cdiv(pl.cdiv(rows, _TARGET_STEPS), sub) * sub)
    tr = min(tr_max, max(tr_min, tr_steps))
    tr = min(tr, rows)                     # full-extent block for small arrays
    grid = (pl.cdiv(rows, tr),)            # ragged last block is masked by Pallas

    block_b = tr * row_bytes
    vmem_limit = int(min(budget, max(32 << 20, 4 * block_b + (4 << 20))))

    out2d = pl.pallas_call(
        _hard_swish_kernel,
        out_shape=jax.ShapeDtypeStruct((rows, lane), dtype),
        grid_spec=pltpu.PrefetchScalarGridSpec(
            num_scalar_prefetch=0,
            grid=grid,
            in_specs=[pl.BlockSpec((tr, lane), lambda i: (i, 0))],
            out_specs=pl.BlockSpec((tr, lane), lambda i: (i, 0)),
        ),
        compiler_params=pltpu.CompilerParams(
            dimension_semantics=("parallel",),
            vmem_limit_bytes=vmem_limit,
        ),
        cost_estimate=pl.CostEstimate(
            flops=4 * padded,
            transcendentals=0,
            bytes_accessed=2 * padded * itemsize,
        ),
        # Only alias when the caller actually donates x at the jit boundary;
        # otherwise XLA would insert a defensive copy (an extra HBM pass).
        input_output_aliases=({0: 0} if donate else {}),
    )(x2d)

    out = out2d.reshape(-1)
    if padded != n:
        out = out[:n]
    return out.reshape(orig_shape)


def _ref_hard_swish(x):
    xf = x.astype(jnp.float32)
    return (xf * jnp.clip(xf + 3.0, 0.0, 6.0) * (1.0 / 6.0)).astype(x.dtype)


if __name__ == "__main__":
    key = jax.random.PRNGKey(0)

    # 1) Small NCHW input consistent with the module's usage in pose_hrnet_lite.
    x = jax.random.normal(key, (2, 4, 16, 16), dtype=jnp.float32) * 3.0
    y = hard_swish(x, min_pallas_elems=0)          # force the Pallas path
    jax.block_until_ready(y)
    y_ref = x * jnp.clip(x + 3.0, 0.0, 6.0) / 6.0
    assert y.shape == x.shape and y.dtype == x.dtype
    assert jnp.allclose(y, y_ref, atol=1e-6, rtol=1e-6)

    # 2) bf16 (16-sublane packing) path.
    x2 = jax.random.normal(jax.random.PRNGKey(1), (2, 16, 64, 64),
                           dtype=jnp.bfloat16) * 3.0
    y2 = hard_swish(x2, min_pallas_elems=0)
    jax.block_until_ready(y2)
    assert y2.shape == x2.shape and y2.dtype == x2.dtype
    assert jnp.allclose(y2.astype(jnp.float32),
                        _ref_hard_swish(x2).astype(jnp.float32),
                        atol=1e-2, rtol=1e-2)

    # 3) Multi-block tiled path (grid > 1), f32.
    x3 = jax.random.normal(jax.random.PRNGKey(2), (2, 32, 64, 64),
                           dtype=jnp.float32) * 3.0
    y3 = hard_swish(x3, min_pallas_elems=0)
    jax.block_until_ready(y3)
    assert jnp.allclose(y3, _ref_hard_swish(x3), atol=1e-6, rtol=1e-6)

    # 4) Size divisible by 256 but not 1024 -> adaptive lane, no pad, no slice.
    x4 = jax.random.normal(jax.random.PRNGKey(3), (37, 256),
                           dtype=jnp.float32) * 3.0
    y4 = hard_swish(x4, min_pallas_elems=0)
    jax.block_until_ready(y4)
    assert jnp.allclose(y4, _ref_hard_swish(x4), atol=1e-6, rtol=1e-6)

    # 5) Awkward size (not a multiple of 128) -> rare pad fallback still correct.
    x5 = jax.random.normal(jax.random.PRNGKey(4), (3, 5, 7, 11),
                           dtype=jnp.float32) * 3.0
    y5 = hard_swish(x5, min_pallas_elems=0)
    jax.block_until_ready(y5)
    assert y5.shape == x5.shape
    assert jnp.allclose(y5, _ref_hard_swish(x5), atol=1e-6, rtol=1e-6)

    print("KERNEL_OK")
</pallas_src>

<mosaic_0001>
module attributes {stable_mosaic.version = 11 : i64} {
  func.func @_hard_swish_kernel(%arg0: i32, %arg1: memref<2x1024xf32, #tpu.memory_space<vmem>>, %arg2: memref<2x1024xf32, #tpu.memory_space<vmem>>) attributes {dimension_semantics = [#tpu.dimension_semantics<parallel>], iteration_bounds = array<i64: 1>, scalar_prefetch = 0 : i64, scratch_operands = 0 : i64, tpu.core_type = #tpu.core_type<tc>, window_params = [{transform_indices = @transform_0, window_bounds = array<i64: 2, 1024>}, {transform_indices = @transform_1, window_bounds = array<i64: 2, 1024>}]} {
    %c0 = arith.constant 0 : index
    %c0_0 = arith.constant 0 : index
    %0 = vector.load %arg1[%c0, %c0_0] : memref<2x1024xf32, #tpu.memory_space<vmem>>, vector<2x1024xf32>
    %cst = arith.constant 3.000000e+00 : f32
    %1 = vector.broadcast %cst : f32 to vector<2x1024xf32>
    %2 = arith.addf %0, %1 : vector<2x1024xf32>
    %cst_1 = arith.constant 0.000000e+00 : f32
    %cst_2 = arith.constant 6.000000e+00 : f32
    %3 = vector.broadcast %cst_1 : f32 to vector<2x1024xf32>
    %4 = arith.maximumf %3, %2 : vector<2x1024xf32>
    %5 = vector.broadcast %cst_2 : f32 to vector<2x1024xf32>
    %6 = arith.minimumf %5, %4 : vector<2x1024xf32>
    %cst_3 = arith.constant 0.166666672 : f32
    %7 = vector.broadcast %cst_3 : f32 to vector<2x1024xf32>
    %8 = arith.mulf %6, %7 : vector<2x1024xf32>
    %9 = arith.mulf %0, %8 : vector<2x1024xf32>
    %c0_4 = arith.constant 0 : index
    %c0_5 = arith.constant 0 : index
    %10 = vector.load %arg2[%c0_4, %c0_5] : memref<2x1024xf32, #tpu.memory_space<vmem>>, vector<2x1024xf32>
    tpu.vector_store %arg2[%c0_4, %c0_5], %9 {strides = array<i32>} : memref<2x1024xf32, #tpu.memory_space<vmem>>, vector<2x1024xf32>,
    return
  }
  func.func @transform_0(%arg0: i32) -> (i32, i32) {
    %c0_i32 = arith.constant 0 : i32
    %c0_i32_0 = arith.constant 0 : i32
    return %arg0, %c0_i32 : i32, i32
  }
  func.func @transform_1(%arg0: i32) -> (i32, i32) {
    %c0_i32 = arith.constant 0 : i32
    %c0_i32_0 = arith.constant 0 : i32
    return %arg0, %c0_i32 : i32, i32
  }
}

</mosaic_0001>

<llo_original>
// kernel: tpu_custom_call.1
$region0: #{tpu_custom_call.1}
  #allocation0 [shape = 'u32[]', space=smem, size = 0x4, offset = 0x4, fixed_abs, tag = 'smem constant byte address 0x4 - core index']
  #allocation1 [shape = 'u32[72,128]{1,0:T(1,128)}', space=vmem, size = 0x9000, scoped, tag = 'internal scratch']
  %s0 = inlined_call_operand.hbm [shape: f32[2,1024], index: 0, kind: input, shape index: {}]
  %s1 = inlined_call_operand.hbm [shape: f32[2,1024], index: 1, kind: output, shape index: {}]
  %s2 = sld [smem:[#allocation0]]
  $region18: #{tpu_custom_call.1} parent=0
    _
  %s4 = ssub.s32 1, %s2
  %s5 = scalar_select 0, %s4, %s2
  $region1: #{tpu_custom_call.1} parent=0
    #allocation2 [shape = 'u8[8192]{0}', space=vmem, size = 0x2000, scoped, tag = 'input window, operand 0, single buffered']
    #allocation3 [shape = 's32[1]{0}', space=sflag, size = 0x4, scoped, tag = 'scoped memory for tpu_custom_call.1']
    #allocation4 [shape = 's32[1]{0}', space=sflag, size = 0x4, scoped, tag = 'scoped memory for tpu_custom_call.1']
    #allocation5 [shape = 'u8[8192]{0}', space=vmem, size = 0x2000, scoped, tag = 'output window, operand 0, single buffered']
    %6 = vsyncpa [#allocation3], 0
    %7 = vsyncpa [#allocation4], 0
    // Predicated region
    $region2: #{tpu_custom_call.1} parent=1 // pred_check
      _
    $region3: #{tpu_custom_call.1} parent=1 // pred_check_branch
      %9 = sbr.rel (0) target = $region5
    $region4: #{tpu_custom_call.1} parent=1 // pred_region
      %11 = vsyncadd [#allocation3], 0
      %s13 = sshll.u32 %s0, 4
      %s14 = int_to_ptr.hbm [resolvable:$true] %s13
      %s15 = sshll.u32 [#allocation2], 4
      %s16 = int_to_ptr.vmem [resolvable:$true] %s15
      %18 = dma.hbm_to_vmem [thread:$0]  %s14, 256, %s16, [#allocation3]
    $region5: #{tpu_custom_call.1} parent=1 // pred_fallthru
      _
    // Predicated region
    $region6: #{tpu_custom_call.1} parent=1 // pred_check
      _
    $region7: #{tpu_custom_call.1} parent=1 // pred_check_branch
      %20 = sbr.rel (0) target = $region9
    $region8: #{tpu_custom_call.1} parent=1 // pred_region
      %22 = dma.done [#allocation3], 256
    $region9: #{tpu_custom_call.1} parent=1 // pred_fallthru
      _
    %v23 = vld [vmem:[#allocation2] sm:$0xff]
    %v24 = vld [vmem:[#allocation2 + $0x8] sm:$0xff]
    %v25 = vadd.f32 %v23, 3.0
    %v26 = vadd.f32 %v24, 3.0
    %v27 = vmax.f32 %v25, 0.0
    %v28 = vmax.f32 %v26, 0.0
    %v29 = vmin.f32 %v27, 6.0
    %v30 = vmin.f32 %v28, 6.0
    %v31 = vmul.f32 %v29, 0.16666667
    %v32 = vmul.f32 %v30, 0.16666667
    %v33 = vmul.f32 %v23, %v31
    %v34 = vmul.f32 %v24, %v32
    %35 = vst [vmem:[#allocation5] sm:$0xff] %v33
    %36 = vst [vmem:[#allocation5 + $0x8] sm:$0xff] %v34
    // Predicated region
    $region10: #{tpu_custom_call.1} parent=1 // pred_check
      _
    $region11: #{tpu_custom_call.1} parent=1 // pred_check_branch
      %38 = sbr.rel (0) target = $region13
    $region12: #{tpu_custom_call.1} parent=1 // pred_region
      %40 = vsyncadd [#allocation4], 0
      %s42 = sshll.u32 [#allocation5], 4
      %s43 = int_to_ptr.vmem [resolvable:$true] %s42
      %s44 = sshll.u32 %s1, 4
      %s45 = int_to_ptr.hbm [resolvable:$true] %s44
      %47 = dma.vmem_to_hbm [thread:$0]  %s43, 256, %s45, [#allocation4]
    $region13: #{tpu_custom_call.1} parent=1 // pred_fallthru
      _
    // Predicated region
    $region14: #{tpu_custom_call.1} parent=1 // pred_check
      _
    $region15: #{tpu_custom_call.1} parent=1 // pred_check_branch
      %49 = sbr.rel (0) target = $region17
    $region16: #{tpu_custom_call.1} parent=1 // pred_region
      %51 = dma.done [#allocation4], 256
    $region17: #{tpu_custom_call.1} parent=1 // pred_fallthru
      _
    %52 = vsyncpa [#allocation3], 1
    %53 = vsyncpa [#allocation4], 1

</llo_original>
